<compile_context>
chip_gen: v7x
topology: tpu7x:2x2x1
jax: 0.10.0
libtpu: 0.0.40
codegen_flags: <defaults>
</compile_context>

<pallas_src>
import jax
import jax.numpy as jnp
from jax.experimental import pallas as pl
from jax.experimental.pallas import tpu as pltpu


def fused_kernel(swin_ref, pwq_ref, sb_ref, x_ref, uwt_ref, ub_ref,
                 fwt_ref, fb_ref, fcs_ref, o_ref):
    # swin_ref: (B, F)      bf16  swin features, full (batch row selected in-kernel)
    # pwq_ref:  (F, tn)     int8  projector weight tile (per-voxel-scaled quantization)
    # sb_ref:   (2, tn)     bf16  row 0: per-voxel dequant scale, row 1: projector bias
    # x_ref:    (Cin, tn)   bf16  raw input voxels (batch dim squeezed by BlockSpec)
    # uwt_ref:  (C, Cin)    bf16  surrogate-unet 1x1x1 conv weight, transposed
    # ub_ref:   (C, 1)      f32   surrogate-unet bias
    # fwt_ref:  (O, C)      f32   final 1x1x1 conv weight, transposed, pre-scaled by 0.8
    # fb_ref:   (O, 1)      f32   final conv bias
    # fcs_ref:  (O, 1)      f32   0.2 * column-sum of final conv weight
    # o_ref:    (O, tn)           softmax output tile (lane-dense, unmasked stores)
    b = pl.program_id(1)  # batch index (innermost grid axis)

    # Select this batch's swin row with a one-hot masked reduce over the tiny (B, F) tile
    # (avoids a dynamic sublane slice; costs a single vreg of VPU/XLU work).
    swin = swin_ref[...]                                              # (B, F) bf16
    row = jax.lax.broadcasted_iota(jnp.int32, swin.shape, 0)
    swin_b = jnp.sum(jnp.where(row == b, swin, jnp.zeros_like(swin)),
                     axis=0, keepdims=True)                           # (1, F) bf16

    # Projector: int8 weights, bf16 MXU dot, f32 accumulate; per-voxel dequant AFTER the dot.
    pw = pwq_ref[...].astype(jnp.bfloat16)                            # (F, tn)
    sb = sb_ref[...].astype(jnp.float32)                              # (2, tn)
    enh = (jnp.dot(swin_b, pw, preferred_element_type=jnp.float32)
           * sb[0:1, :] + sb[1:2, :])                                 # (1, tn) f32

    # Surrogate UNet3D final features: 1x1x1 conv + ReLU (bf16 MXU, f32 accumulate).
    xu = jnp.maximum(
        jnp.dot(uwt_ref[...], x_ref[...], preferred_element_type=jnp.float32)
        + ub_ref[...], 0.0)                                           # (C, tn) f32

    # Final conv with the 0.8 / 0.2 fusion folded into fwt / fcs.
    logits = (jnp.dot(fwt_ref[...], xu, preferred_element_type=jnp.float32)
              + fcs_ref[...] * enh + fb_ref[...])                     # (O, tn) f32

    # Softmax over the channel (sublane) axis.
    m = jnp.max(logits, axis=0, keepdims=True)
    e = jnp.exp(logits - m)
    inv = pl.reciprocal(jnp.sum(e, axis=0, keepdims=True), approx=True)
    o_ref[...] = (e * inv).astype(o_ref.dtype)


def unet3d_with_swin_fusion(x_ncdhw, params, *, tile_n=4096, out_dtype=jnp.float32,
                            proj_w_format="int8"):
    """x_ncdhw: (B, Cin, D, H, W) float32. Returns (B, out_ch, D, H, W) in out_dtype."""
    B, Cin, D, H, W = x_ncdhw.shape
    N = D * H * W
    F = params['swin_w'].shape[1]
    C = params['unet_w'].shape[1]
    O = params['fin_w'].shape[1]

    # ---- JAX glue: free channels-first reshape, single bf16 copy of x feeds everything ----
    x_bcn = x_ncdhw.reshape(B, Cin, N).astype(jnp.bfloat16)          # free reshape + bf16 cast
    # TinySwinTransformer surrogate (global mean-pool + Linear + ReLU); reads the bf16 copy,
    # f32 accumulation.  TODO(synk): fold the mean-pool into a Pallas reduction pre-pass to
    # remove this second read of x entirely for very large volumes.
    swin = jnp.maximum(
        jnp.mean(x_bcn, axis=-1, dtype=jnp.float32) @ params['swin_w'] + params['swin_b'], 0.0)
    swin_bf16 = swin.astype(jnp.bfloat16)                            # (B, F)

    # Projector weights: dominant HBM stream (F bytes/voxel after int8).  Per-voxel scale is
    # applied after the dot, so the MXU stays bf16 on every TPU generation.
    pw = params['proj_w']                                            # (F, N) f32
    if proj_w_format == "int8":
        scale = jnp.maximum(jnp.max(jnp.abs(pw), axis=0, keepdims=True), 1e-30) / 127.0
        pw_q = jnp.clip(jnp.round(pw / scale), -127, 127).astype(jnp.int8)
    else:  # 'bf16' fallback (higher HBM traffic, slightly different rounding)
        scale = jnp.ones((1, N), jnp.float32)
        pw_q = pw.astype(jnp.bfloat16)
    sb = jnp.concatenate([scale, params['proj_b'].reshape(1, N)], axis=0).astype(jnp.bfloat16)

    # Pre-transposed / pre-folded small weights (channels-first orientation).
    uw_t = jnp.transpose(params['unet_w']).astype(jnp.bfloat16)      # (C, Cin)
    ub = params['unet_b'].reshape(C, 1)                              # (C, 1) f32
    fw_t = jnp.transpose(0.8 * params['fin_w'])                      # (O, C) f32, 0.8 folded
    fb = params['fin_b'].reshape(O, 1)                               # (O, 1) f32
    fw_colsum = (0.2 * jnp.sum(params['fin_w'], axis=0)).reshape(O, 1)

    tile_n = min(tile_n, N)
    # TODO(synk): pad a ragged last tile for volumes where D*H*W is not a multiple of 128.
    assert N % tile_n == 0 and tile_n % 128 == 0, (N, tile_n)
    n_tiles = N // tile_n
    # Grid: voxel tiles outer, batch INNERMOST so pw_q / sb blocks keep the same index across
    # consecutive steps and are not re-DMA'd per batch row.  Total steps = n_tiles * B >= 2,
    # so v7x's 2 TensorCores both get work even for tiny volumes.
    grid = (n_tiles, B)

    osize = jnp.dtype(out_dtype).itemsize
    cost = pl.CostEstimate(
        flops=int(2 * N * (B * F + B * Cin * C + B * C * O)),
        transcendentals=int(B * O * N),
        bytes_accessed=int(pw_q.size * pw_q.dtype.itemsize + sb.size * 2
                           + B * Cin * N * 2 + B * O * N * osize + 4096),
    )

    out_bon = pl.pallas_call(
        fused_kernel,
        out_shape=jax.ShapeDtypeStruct((B, O, N), out_dtype),
        grid_spec=pltpu.PrefetchScalarGridSpec(
            num_scalar_prefetch=0,
            grid=grid,
            in_specs=[
                pl.BlockSpec((B, F), lambda j, b: (0, 0)),                 # swin (bf16, full)
                pl.BlockSpec((F, tile_n), lambda j, b: (0, j)),            # proj_w (int8)
                pl.BlockSpec((2, tile_n), lambda j, b: (0, j)),            # [scale; proj_b] bf16
                pl.BlockSpec((None, Cin, tile_n), lambda j, b: (b, 0, j)), # x (bf16, batch squeezed)
                pl.BlockSpec((C, Cin), lambda j, b: (0, 0)),               # unet_w^T (bf16)
                pl.BlockSpec((C, 1), lambda j, b: (0, 0)),                 # unet_b
                pl.BlockSpec((O, C), lambda j, b: (0, 0)),                 # 0.8 * fin_w^T
                pl.BlockSpec((O, 1), lambda j, b: (0, 0)),                 # fin_b
                pl.BlockSpec((O, 1), lambda j, b: (0, 0)),                 # 0.2 * colsum(fin_w)
            ],
            # NOTE: pipeline_mode=pl.Buffered(3) on proj_w/x is available if DMAs are still
            #       exposed after the tile_n increase; omitted here (default double-buffering).
            out_specs=pl.BlockSpec((None, O, tile_n), lambda j, b: (b, 0, j)),
        ),
        compiler_params=pltpu.CompilerParams(
            dimension_semantics=("parallel", "parallel"),
            vmem_limit_bytes=32 * 1024 * 1024,   # explicit: safe on v5e/v6e/v7x
        ),
        cost_estimate=cost,
    )(swin_bf16, pw_q, sb, x_bcn, uw_t, ub, fw_t, fb, fw_colsum)

    # (B, O, N) -> (B, O, D, H, W): free reshape, no transpose.
    return out_bon.reshape(B, O, D, H, W)


def reference_jax(x_ncdhw, params):
    """Pure-JAX f32 reference of the same forward pass (for validation)."""
    B, Cin, D, H, W = x_ncdhw.shape
    N = D * H * W
    O = params['fin_w'].shape[1]
    x_bcn = x_ncdhw.reshape(B, Cin, N)
    swin = jnp.maximum(jnp.mean(x_bcn, axis=-1) @ params['swin_w'] + params['swin_b'], 0.0)
    enh = swin @ params['proj_w'] + params['proj_b']                        # (B, N)
    xu = jnp.maximum(jnp.einsum('bcn,ck->bkn', x_bcn, params['unet_w'])
                     + params['unet_b'][None, :, None], 0.0)                # (B, C, N)
    fused = 0.8 * xu + 0.2 * enh[:, None, :]
    logits = (jnp.einsum('bcn,co->bon', fused, params['fin_w'])
              + params['fin_b'][None, :, None])                             # (B, O, N)
    out = jax.nn.softmax(logits, axis=1)
    return out.reshape(B, O, D, H, W)


def init_params(key, *, in_ch, unet_ch, out_ch, swin_dim, n_vox):
    ks = jax.random.split(key, 8)
    s = 0.1
    return {
        'swin_w': s * jax.random.normal(ks[0], (in_ch, swin_dim), jnp.float32),
        'swin_b': s * jax.random.normal(ks[1], (swin_dim,), jnp.float32),
        'proj_w': s * jax.random.normal(ks[2], (swin_dim, n_vox), jnp.float32),
        'proj_b': s * jax.random.normal(ks[3], (n_vox,), jnp.float32),
        'unet_w': s * jax.random.normal(ks[4], (in_ch, unet_ch), jnp.float32),
        'unet_b': s * jax.random.normal(ks[5], (unet_ch,), jnp.float32),
        'fin_w': s * jax.random.normal(ks[6], (unet_ch, out_ch), jnp.float32),
        'fin_b': s * jax.random.normal(ks[7], (out_ch,), jnp.float32),
    }


if __name__ == "__main__":
    key = jax.random.PRNGKey(0)
    B, Cin, D, H, W = 2, 4, 8, 8, 8          # small volume, N = 512
    unet_ch, out_ch, swin_dim = 8, 4, 32
    N = D * H * W

    k_x, k_p = jax.random.split(key)
    x = jax.random.normal(k_x, (B, Cin, D, H, W), jnp.float32)
    params = init_params(k_p, in_ch=Cin, unet_ch=unet_ch, out_ch=out_ch,
                         swin_dim=swin_dim, n_vox=N)

    # Default tile_n=4096 (clamped to N here -> grid=(1, 2), still >=2 parallel steps so
    # both v7x TensorCores get a batch row).  For real volumes sweep tile_n in 2048-8192.
    out = unet3d_with_swin_fusion(x, params)
    out = jax.block_until_ready(out)

    ref = reference_jax(x, params)
    assert out.shape == (B, out_ch, D, H, W), out.shape
    # int8 proj_w (per-voxel scale) + bf16 x/unet_w/swin + approx-reciprocal softmax
    # bound accuracy to ~1e-3; use proj_w_format='bf16', f32 x and approx=False if a
    # downstream consumer ever needs tighter agreement.
    max_err = float(jnp.max(jnp.abs(out.astype(jnp.float32) - ref)))
    assert max_err < 5e-3, f"mismatch vs JAX reference, max_err={max_err}"

    print("KERNEL_OK")
</pallas_src>

<mosaic_0001>
module attributes {stable_mosaic.version = 11 : i64} {
  func.func @fused_kernel(%arg0: i32, %arg1: i32, %arg2: memref<2x32xbf16, #tpu.memory_space<vmem>>, %arg3: memref<32x512xi8, #tpu.memory_space<vmem>>, %arg4: memref<2x512xbf16, #tpu.memory_space<vmem>>, %arg5: memref<1x4x512xbf16, #tpu.memory_space<vmem>>, %arg6: memref<8x4xbf16, #tpu.memory_space<vmem>>, %arg7: memref<8x1xf32, #tpu.memory_space<vmem>>, %arg8: memref<4x8xf32, #tpu.memory_space<vmem>>, %arg9: memref<4x1xf32, #tpu.memory_space<vmem>>, %arg10: memref<4x1xf32, #tpu.memory_space<vmem>>, %arg11: memref<1x4x512xf32, #tpu.memory_space<vmem>>) attributes {dimension_semantics = [#tpu.dimension_semantics<parallel>, #tpu.dimension_semantics<parallel>], iteration_bounds = array<i64: 1, 2>, scalar_prefetch = 0 : i64, scratch_operands = 0 : i64, tpu.core_type = #tpu.core_type<tc>, window_params = [{pipeline_mode = #tpu.pipeline_mode<synchronous>, transform_indices = @transform_0, window_bounds = array<i64: 2, 32>}, {transform_indices = @transform_1, window_bounds = array<i64: 32, 512>}, {transform_indices = @transform_2, window_bounds = array<i64: 2, 512>}, {transform_indices = @transform_3, window_bounds = array<i64: 1, 4, 512>}, {pipeline_mode = #tpu.pipeline_mode<synchronous>, transform_indices = @transform_4, window_bounds = array<i64: 8, 4>}, {pipeline_mode = #tpu.pipeline_mode<synchronous>, transform_indices = @transform_5, window_bounds = array<i64: 8, 1>}, {pipeline_mode = #tpu.pipeline_mode<synchronous>, transform_indices = @transform_6, window_bounds = array<i64: 4, 8>}, {pipeline_mode = #tpu.pipeline_mode<synchronous>, transform_indices = @transform_7, window_bounds = array<i64: 4, 1>}, {pipeline_mode = #tpu.pipeline_mode<synchronous>, transform_indices = @transform_8, window_bounds = array<i64: 4, 1>}, {transform_indices = @transform_9, window_bounds = array<i64: 1, 4, 512>}]} {
    %c0 = arith.constant 0 : index
    %c0_0 = arith.constant 0 : index
    %0 = vector.load %arg2[%c0, %c0_0] : memref<2x32xbf16, #tpu.memory_space<vmem>>, vector<2x32xbf16>
    %1 = tpu.iota {dimensions = array<i32: 0>} : vector<2x32xi32>
    %2 = vector.broadcast %arg1 : i32 to vector<2x32xi32>
    %3 = arith.cmpi eq, %1, %2 : vector<2x32xi32>
    %cst = arith.constant 0.000000e+00 : bf16
    %4 = vector.broadcast %cst : bf16 to vector<2x32xbf16>
    %5 = arith.select %3, %0, %4 : vector<2x32xi1>, vector<2x32xbf16>
    %6 = arith.extf %5 : vector<2x32xbf16> to vector<2x32xf32>
    %cst_1 = arith.constant dense<0.000000e+00> : vector<32xf32>
    %7 = vector.multi_reduction <add>, %6, %cst_1 [0] : vector<2x32xf32> to vector<32xf32>
    %8 = vector.shape_cast %7 : vector<32xf32> to vector<1x32xf32>
    %9 = arith.truncf %8 : vector<1x32xf32> to vector<1x32xbf16>
    %c0_2 = arith.constant 0 : index
    %c0_3 = arith.constant 0 : index
    %10 = vector.load %arg3[%c0_2, %c0_3] : memref<32x512xi8, #tpu.memory_space<vmem>>, vector<32x512xi8>
    %11 = arith.sitofp %10 : vector<32x512xi8> to vector<32x512xbf16>
    %c0_4 = arith.constant 0 : index
    %c0_5 = arith.constant 0 : index
    %12 = vector.load %arg4[%c0_4, %c0_5] : memref<2x512xbf16, #tpu.memory_space<vmem>>, vector<2x512xbf16>
    %13 = arith.extf %12 : vector<2x512xbf16> to vector<2x512xf32>
    %cst_6 = arith.constant dense<0.000000e+00> : vector<1x512xf32>
    %14 = tpu.matmul %9, %11, %cst_6 {dimension_numbers = #tpu.dot_dimension_numbers<[1], [0], [0], [1], [0, 0, 1, 1], [], []>} : vector<1x32xbf16>, vector<32x512xbf16>, vector<1x512xf32> -> vector<1x512xf32>
    %15 = vector.extract_strided_slice %13 {offsets = [0, 0], sizes = [1, 512], strides = [1, 1]} : vector<2x512xf32> to vector<1x512xf32>
    %16 = arith.mulf %14, %15 : vector<1x512xf32>
    %17 = vector.extract_strided_slice %13 {offsets = [1, 0], sizes = [1, 512], strides = [1, 1]} : vector<2x512xf32> to vector<1x512xf32>
    %18 = arith.addf %16, %17 : vector<1x512xf32>
    %c0_7 = arith.constant 0 : index
    %c0_8 = arith.constant 0 : index
    %19 = vector.load %arg6[%c0_7, %c0_8] : memref<8x4xbf16, #tpu.memory_space<vmem>>, vector<8x4xbf16>
    %c0_9 = arith.constant 0 : index
    %c0_10 = arith.constant 0 : index
    %c0_11 = arith.constant 0 : index
    %20 = vector.load %arg5[%c0_9, %c0_10, %c0_11] : memref<1x4x512xbf16, #tpu.memory_space<vmem>>, vector<1x4x512xbf16>
    %21 = vector.shape_cast %20 : vector<1x4x512xbf16> to vector<4x512xbf16>
    %cst_12 = arith.constant dense<0.000000e+00> : vector<8x512xf32>
    %22 = tpu.matmul %19, %21, %cst_12 {dimension_numbers = #tpu.dot_dimension_numbers<[1], [0], [0], [1], [0, 0, 1, 1], [], []>} : vector<8x4xbf16>, vector<4x512xbf16>, vector<8x512xf32> -> vector<8x512xf32>
    %c0_13 = arith.constant 0 : index
    %c0_14 = arith.constant 0 : index
    %23 = vector.load %arg7[%c0_13, %c0_14] : memref<8x1xf32, #tpu.memory_space<vmem>>, vector<8x1xf32>
    %24 = vector.broadcast %23 : vector<8x1xf32> to vector<8x512xf32>
    %25 = arith.addf %22, %24 : vector<8x512xf32>
    %cst_15 = arith.constant 0.000000e+00 : f32
    %26 = vector.broadcast %cst_15 : f32 to vector<8x512xf32>
    %27 = arith.maximumf %25, %26 : vector<8x512xf32>
    %c0_16 = arith.constant 0 : index
    %c0_17 = arith.constant 0 : index
    %28 = vector.load %arg8[%c0_16, %c0_17] : memref<4x8xf32, #tpu.memory_space<vmem>>, vector<4x8xf32>
    %cst_18 = arith.constant dense<0.000000e+00> : vector<4x512xf32>
    %29 = tpu.matmul %28, %27, %cst_18 {dimension_numbers = #tpu.dot_dimension_numbers<[1], [0], [0], [1], [0, 0, 1, 1], [], []>} : vector<4x8xf32>, vector<8x512xf32>, vector<4x512xf32> -> vector<4x512xf32>
    %c0_19 = arith.constant 0 : index
    %c0_20 = arith.constant 0 : index
    %30 = vector.load %arg10[%c0_19, %c0_20] : memref<4x1xf32, #tpu.memory_space<vmem>>, vector<4x1xf32>
    %31 = vector.broadcast %30 : vector<4x1xf32> to vector<4x512xf32>
    %32 = vector.broadcast %18 : vector<1x512xf32> to vector<4x512xf32>
    %33 = arith.mulf %31, %32 : vector<4x512xf32>
    %34 = arith.addf %29, %33 : vector<4x512xf32>
    %c0_21 = arith.constant 0 : index
    %c0_22 = arith.constant 0 : index
    %35 = vector.load %arg9[%c0_21, %c0_22] : memref<4x1xf32, #tpu.memory_space<vmem>>, vector<4x1xf32>
    %36 = vector.broadcast %35 : vector<4x1xf32> to vector<4x512xf32>
    %37 = arith.addf %34, %36 : vector<4x512xf32>
    %cst_23 = arith.constant dense<0xFF800000> : vector<512xf32>
    %38 = vector.multi_reduction <maximumf>, %37, %cst_23 [0] : vector<4x512xf32> to vector<512xf32>
    %39 = vector.shape_cast %38 : vector<512xf32> to vector<1x512xf32>
    %40 = vector.broadcast %39 : vector<1x512xf32> to vector<4x512xf32>
    %41 = arith.subf %37, %40 : vector<4x512xf32>
    %42 = math.exp %41 : vector<4x512xf32>
    %cst_24 = arith.constant dense<0.000000e+00> : vector<512xf32>
    %43 = vector.multi_reduction <add>, %42, %cst_24 [0] : vector<4x512xf32> to vector<512xf32>
    %44 = vector.shape_cast %43 : vector<512xf32> to vector<1x512xf32>
    %45 = tpu.reciprocal %44 {approx = true} : vector<1x512xf32> -> vector<1x512xf32>
    %46 = vector.broadcast %45 : vector<1x512xf32> to vector<4x512xf32>
    %47 = arith.mulf %42, %46 : vector<4x512xf32>
    %c0_25 = arith.constant 0 : index
    %c0_26 = arith.constant 0 : index
    %c0_27 = arith.constant 0 : index
    %48 = vector.load %arg11[%c0_25, %c0_26, %c0_27] : memref<1x4x512xf32, #tpu.memory_space<vmem>>, vector<1x4x512xf32>
    %49 = vector.shape_cast %48 : vector<1x4x512xf32> to vector<4x512xf32>
    %50 = vector.shape_cast %47 : vector<4x512xf32> to vector<1x4x512xf32>
    tpu.vector_store %arg11[%c0_25, %c0_26, %c0_27], %50 {strides = array<i32>} : memref<1x4x512xf32, #tpu.memory_space<vmem>>, vector<1x4x512xf32>,
    return
  }
  func.func @transform_0(%arg0: i32, %arg1: i32) -> (i32, i32) {
    %c0_i32 = arith.constant 0 : i32
    %c0_i32_0 = arith.constant 0 : i32
    %c0_i32_1 = arith.constant 0 : i32
    return %c0_i32, %c0_i32_0 : i32, i32
  }
  func.func @transform_1(%arg0: i32, %arg1: i32) -> (i32, i32) {
    %c0_i32 = arith.constant 0 : i32
    %c0_i32_0 = arith.constant 0 : i32
    return %c0_i32, %arg0 : i32, i32
  }
  func.func @transform_2(%arg0: i32, %arg1: i32) -> (i32, i32) {
    %c0_i32 = arith.constant 0 : i32
    %c0_i32_0 = arith.constant 0 : i32
    return %c0_i32, %arg0 : i32, i32
  }
  func.func @transform_3(%arg0: i32, %arg1: i32) -> (i32, i32, i32) {
    %c0_i32 = arith.constant 0 : i32
    %c0_i32_0 = arith.constant 0 : i32
    return %arg1, %c0_i32, %arg0 : i32, i32, i32
  }
  func.func @transform_4(%arg0: i32, %arg1: i32) -> (i32, i32) {
    %c0_i32 = arith.constant 0 : i32
    %c0_i32_0 = arith.constant 0 : i32
    %c0_i32_1 = arith.constant 0 : i32
    return %c0_i32, %c0_i32_0 : i32, i32
  }
  func.func @transform_5(%arg0: i32, %arg1: i32) -> (i32, i32) {
    %c0_i32 = arith.constant 0 : i32
    %c0_i32_0 = arith.constant 0 : i32
    %c0_i32_1 = arith.constant 0 : i32
    return %c0_i32, %c0_i32_0 : i32, i32
  }
  func.func @transform_6(%arg0: i32, %arg1: i32) -> (i32, i32) {
    %c0_i32 = arith.constant 0 : i32
    %c0_i32_0 = arith.constant 0 : i32
    %c0_i32_1 = arith.constant 0 : i32
    return %c0_i32, %c0_i32_0 : i32, i32
  }
  func.func @transform_7(%arg0: i32, %arg1: i32) -> (i32, i32) {
    %c0_i32 = arith.constant 0 : i32
    %c0_i32_0 = arith.constant 0 : i32
    %c0_i32_1 = arith.constant 0 : i32
    return %c0_i32, %c0_i32_0 : i32, i32
  }
  func.func @transform_8(%arg0: i32, %arg1: i32) -> (i32, i32) {
    %c0_i32 = arith.constant 0 : i32
    %c0_i32_0 = arith.constant 0 : i32
    %c0_i32_1 = arith.constant 0 : i32
    return %c0_i32, %c0_i32_0 : i32, i32
  }
  func.func @transform_9(%arg0: i32, %arg1: i32) -> (i32, i32, i32) {
    %c0_i32 = arith.constant 0 : i32
    %c0_i32_0 = arith.constant 0 : i32
    return %arg1, %c0_i32, %arg0 : i32, i32, i32
  }
}

</mosaic_0001>

<llo_original>
// kernel: tpu_custom_call.1
$region0: #{tpu_custom_call.1}
  #allocation0 [shape = 'u32[]', space=smem, size = 0x4, offset = 0x4, fixed_abs, tag = 'smem constant byte address 0x4 - core index']
  #allocation1 [shape = 'u32[144,128]{1,0:T(1,128)}', space=vmem, size = 0x12000, scoped, tag = 'internal scratch']
  %s0 = inlined_call_operand.vmem [shape: bf16[2,32], index: 0, kind: input, shape index: {}]
  %s1 = inlined_call_operand.hbm [shape: s8[32,512], index: 1, kind: input, shape index: {}]
  %s2 = inlined_call_operand.vmem [shape: bf16[2,512], index: 2, kind: input, shape index: {}]
  %s3 = inlined_call_operand.vmem [shape: bf16[2,4,512], index: 3, kind: input, shape index: {}]
  %s4 = inlined_call_operand.vmem [shape: bf16[8,4], index: 4, kind: input, shape index: {}]
  %s5 = inlined_call_operand.vmem [shape: f32[8,1], index: 5, kind: input, shape index: {}]
  %s6 = inlined_call_operand.vmem [shape: f32[4,8], index: 6, kind: input, shape index: {}]
  %s7 = inlined_call_operand.vmem [shape: f32[4,1], index: 7, kind: input, shape index: {}]
  %s8 = inlined_call_operand.vmem [shape: f32[4,1], index: 8, kind: input, shape index: {}]
  %s9 = inlined_call_operand.hbm [shape: f32[2,4,512], index: 9, kind: output, shape index: {}]
  %s10 = sld [smem:[#allocation0]]
  $region73: #{tpu_custom_call.1} parent=0
    _
  %s12 = ssub.s32 1, %s10
  %s13 = scalar_select 0, %s12, %s10
  $region1: #{tpu_custom_call.1} parent=0
    #allocation2 [shape = 'u8[16384]{0}', space=vmem, size = 0x4000, scoped, tag = 'input window, operand 1, single buffered']
    #allocation3 [shape = 's32[2]{0}', space=sflag, size = 0x8, scoped, tag = 'scoped memory for tpu_custom_call.1']
    #allocation4 [shape = 's32[2]{0}', space=sflag, size = 0x8, scoped, tag = 'scoped memory for tpu_custom_call.1']
    #allocation5 [shape = 'u8[16384]{0}', space=vmem, size = 0x4000, scoped, tag = 'output window, operand 0']
    %14 = vsyncpa [#allocation3], 0
    %15 = vsyncpa [#allocation4], 0
    %s16 = scalar_lea.sflag [#allocation4], 1
    %17 = vsyncpa %s16, 0
    loop: start=0, step=1, limit=4
    $region2: #{tpu_custom_call.1} parent=1 // loop_pre_header
      _
    $region3: #{tpu_custom_call.1} parent=1 // loop_header
      %s19 = sphi 0, %s23
      %p20 = scmp.ge.s32.totalorder %s19, 4
      %s26 = sphi 0, %s38
      %s27 = sphi 0, %s34
      %s28 = sphi 0, %s26
      %s29 = sphi 0, %s27
      %s30 = sphi 0, %s28
      %s31 = sphi 0, %s29
      %s39 = sphi 0, %s39
      %s41 = sphi 0, %s39
      %s42 = sphi 0, %s41
      %s56 = sphi 0, %s42
      %s62 = sphi 0, %s64
      %s65 = sphi 0, %s62
      %s66 = sphi 0, %s65
      %s82 = sphi 0, %s66
      %s88 = sphi 0, %s90
      %s91 = sphi 0, %s88
      %s92 = sphi 0, %s91
      %s108 = sphi 0, %s92
      %s116 = sphi 0, %s118
      %s119 = sphi 0, %s116
      %s120 = sphi 0, %s119
      %s136 = sphi 0, %s120
      %s140 = sphi 0, %s140
      %s142 = sphi 0, %s140
      %s143 = sphi 0, %s142
      %s157 = sphi 0, %s143
      %s161 = sphi 0, %s161
      %s163 = sphi 0, %s161
      %s164 = sphi 0, %s163
      %s178 = sphi 0, %s164
      %s182 = sphi 0, %s182
      %s184 = sphi 0, %s182
      %s185 = sphi 0, %s184
      %s199 = sphi 0, %s185
      %s203 = sphi 0, %s203
      %s205 = sphi 0, %s203
      %s206 = sphi 0, %s205
      %s220 = sphi 0, %s206
      %s224 = sphi 0, %s224
      %s226 = sphi 0, %s224
      %s227 = sphi 0, %s226
      %s241 = sphi 0, %s227
      %s249 = sphi 0, %s251
      %s252 = sphi 0, %s249
      %s253 = sphi 0, %s252
      %s269 = sphi 0, %s253
    $region4: #{tpu_custom_call.1} parent=1 // loop_header_branch
      %22 = sbr.rel (%p20) target = $region8
    $region5: #{tpu_custom_call.1} parent=1 // loop_body
      %s24 = ssub.s32 %s19, 1
      %s25 = ssub.s32 %s19, 2
      %s32 = sadd.s32 1, %s27
      %p33 = scmp.ge.s32.totalorder %s32, 2
      %s34 = scalar_select %p33, 0, %s32
      %s35 = sadd.s32 1, %s26
      %s36 = scalar_select %p33, %s35, %s26
      %p37 = scmp.ge.s32.totalorder %s36, 1
      %s38 = scalar_select %p37, 0, %s36
      %s40 = sadd.s32 %s39, 1
      %p43 = scmp.eq.s32.totalorder %s19, 1
      %p44 = scmp.ne.s32.totalorder %s39, %s41
      %p45 = scmp.eq.s32.totalorder %s19, 0
      %p46 = por %p44, %p45
      %p47 = scmp.ne.s32.totalorder %s39, %s41
      %p48 = scmp.eq.s32.totalorder %s24, 1
      %p49 = por %p47, %p48
      %p50 = scmp.ne.s32.totalorder %s41, %s42
      %p51 = scmp.eq.s32.totalorder %s24, 0
      %p52 = por %p50, %p51
      %p53 = scmp.ne.s32.totalorder %s41, %s42
      %p54 = scmp.eq.s32.totalorder %s25, 1
      %p55 = por %p53, %p54
      %p57 = scmp.ne.s32.totalorder %s42, %s56
      %p58 = scmp.eq.s32.totalorder %s25, 0
      %p59 = por %p57, %p58
      %s60 = ssub.s32 %s26, %s38
      %p61 = scmp.eq.s32.totalorder %s60, 0
      %s63 = sadd.s32 %s62, 1
      %s64 = scalar_select %p61, %s62, %s63
      %p67 = pneg %p61
      %p68 = scmp.eq.s32.totalorder %s19, 1
      %p69 = por %p67, %p68
      %p70 = scmp.ne.s32.totalorder %s62, %s65
      %p71 = scmp.eq.s32.totalorder %s19, 0
      %p72 = por %p70, %p71
      %p73 = scmp.ne.s32.totalorder %s62, %s65
      %p74 = scmp.eq.s32.totalorder %s24, 1
      %p75 = por %p73, %p74
      %p76 = scmp.ne.s32.totalorder %s65, %s66
      %p77 = scmp.eq.s32.totalorder %s24, 0
      %p78 = por %p76, %p77
      %p79 = scmp.ne.s32.totalorder %s65, %s66
      %p80 = scmp.eq.s32.totalorder %s25, 1
      %p81 = por %p79, %p80
      %p83 = scmp.ne.s32.totalorder %s66, %s82
      %p84 = scmp.eq.s32.totalorder %s25, 0
      %p85 = por %p83, %p84
      %s86 = ssub.s32 %s26, %s38
      %p87 = scmp.eq.s32.totalorder %s86, 0
      %s89 = sadd.s32 %s88, 1
      %s90 = scalar_select %p87, %s88, %s89
      %p93 = pneg %p87
      %p94 = scmp.eq.s32.totalorder %s19, 1
      %p95 = por %p93, %p94
      %p96 = scmp.ne.s32.totalorder %s88, %s91
      %p97 = scmp.eq.s32.totalorder %s19, 0
      %p98 = por %p96, %p97
      %p99 = scmp.ne.s32.totalorder %s88, %s91
      %p100 = scmp.eq.s32.totalorder %s24, 1
      %p101 = por %p99, %p100
      %p102 = scmp.ne.s32.totalorder %s91, %s92
      %p103 = scmp.eq.s32.totalorder %s24, 0
      %p104 = por %p102, %p103
      %p105 = scmp.ne.s32.totalorder %s91, %s92
      %p106 = scmp.eq.s32.totalorder %s25, 1
      %p107 = por %p105, %p106
      %p109 = scmp.ne.s32.totalorder %s92, %s108
      %p110 = scmp.eq.s32.totalorder %s25, 0
      %p111 = por %p109, %p110
      %s112 = ssub.s32 %s27, %s34
      %s113 = ssub.s32 %s26, %s38
      %s114 = sor.u32 %s112, %s113
      %p115 = scmp.eq.s32.totalorder %s114, 0
      %s117 = sadd.s32 %s116, 1
      %s118 = scalar_select %p115, %s116, %s117
      %p121 = pneg %p115
      %p122 = scmp.eq.s32.totalorder %s19, 1
      %p123 = por %p121, %p122
      %p124 = scmp.ne.s32.totalorder %s116, %s119
      %p125 = scmp.eq.s32.totalorder %s19, 0
      %p126 = por %p124, %p125
      %p127 = scmp.ne.s32.totalorder %s116, %s119
      %p128 = scmp.eq.s32.totalorder %s24, 1
      %p129 = por %p127, %p128
      %p130 = scmp.ne.s32.totalorder %s119, %s120
      %p131 = scmp.eq.s32.totalorder %s24, 0
      %p132 = por %p130, %p131
      %p133 = scmp.ne.s32.totalorder %s119, %s120
      %p134 = scmp.eq.s32.totalorder %s25, 1
      %p135 = por %p133, %p134
      %p137 = scmp.ne.s32.totalorder %s120, %s136
      %p138 = scmp.eq.s32.totalorder %s25, 0
      %p139 = por %p137, %p138
      %s141 = sadd.s32 %s140, 1
      %p144 = scmp.eq.s32.totalorder %s19, 1
      %p145 = scmp.ne.s32.totalorder %s140, %s142
      %p146 = scmp.eq.s32.totalorder %s19, 0
      %p147 = por %p145, %p146
      %p148 = scmp.ne.s32.totalorder %s140, %s142
      %p149 = scmp.eq.s32.totalorder %s24, 1
      %p150 = por %p148, %p149
      %p151 = scmp.ne.s32.totalorder %s142, %s143
      %p152 = scmp.eq.s32.totalorder %s24, 0
      %p153 = por %p151, %p152
      %p154 = scmp.ne.s32.totalorder %s142, %s143
      %p155 = scmp.eq.s32.totalorder %s25, 1
      %p156 = por %p154, %p155
      %p158 = scmp.ne.s32.totalorder %s143, %s157
      %p159 = scmp.eq.s32.totalorder %s25, 0
      %p160 = por %p158, %p159
      %s162 = sadd.s32 %s161, 1
      %p165 = scmp.eq.s32.totalorder %s19, 1
      %p166 = scmp.ne.s32.totalorder %s161, %s163
      %p167 = scmp.eq.s32.totalorder %s19, 0
      %p168 = por %p166, %p167
      %p169 = scmp.ne.s32.totalorder %s161, %s163
      %p170 = scmp.eq.s32.totalorder %s24, 1
      %p171 = por %p169, %p170
      %p172 = scmp.ne.s32.totalorder %s163, %s164
      %p173 = scmp.eq.s32.totalorder %s24, 0
      %p174 = por %p172, %p173
      %p175 = scmp.ne.s32.totalorder %s163, %s164
      %p176 = scmp.eq.s32.totalorder %s25, 1
      %p177 = por %p175, %p176
      %p179 = scmp.ne.s32.totalorder %s164, %s178
      %p180 = scmp.eq.s32.totalorder %s25, 0
      %p181 = por %p179, %p180
      %s183 = sadd.s32 %s182, 1
      %p186 = scmp.eq.s32.totalorder %s19, 1
      %p187 = scmp.ne.s32.totalorder %s182, %s184
      %p188 = scmp.eq.s32.totalorder %s19, 0
      %p189 = por %p187, %p188
      %p190 = scmp.ne.s32.totalorder %s182, %s184
      %p191 = scmp.eq.s32.totalorder %s24, 1
      %p192 = por %p190, %p191
      %p193 = scmp.ne.s32.totalorder %s184, %s185
      %p194 = scmp.eq.s32.totalorder %s24, 0
      %p195 = por %p193, %p194
      %p196 = scmp.ne.s32.totalorder %s184, %s185
      %p197 = scmp.eq.s32.totalorder %s25, 1
      %p198 = por %p196, %p197
      %p200 = scmp.ne.s32.totalorder %s185, %s199
      %p201 = scmp.eq.s32.totalorder %s25, 0
      %p202 = por %p200, %p201
      %s204 = sadd.s32 %s203, 1
      %p207 = scmp.eq.s32.totalorder %s19, 1
      %p208 = scmp.ne.s32.totalorder %s203, %s205
      %p209 = scmp.eq.s32.totalorder %s19, 0
      %p210 = por %p208, %p209
      %p211 = scmp.ne.s32.totalorder %s203, %s205
      %p212 = scmp.eq.s32.totalorder %s24, 1
      %p213 = por %p211, %p212
      %p214 = scmp.ne.s32.totalorder %s205, %s206
      %p215 = scmp.eq.s32.totalorder %s24, 0
      %p216 = por %p214, %p215
      %p217 = scmp.ne.s32.totalorder %s205, %s206
      %p218 = scmp.eq.s32.totalorder %s25, 1
      %p219 = por %p217, %p218
      %p221 = scmp.ne.s32.totalorder %s206, %s220
      %p222 = scmp.eq.s32.totalorder %s25, 0
      %p223 = por %p221, %p222
      %s225 = sadd.s32 %s224, 1
      %p228 = scmp.eq.s32.totalorder %s19, 1
      %p229 = scmp.ne.s32.totalorder %s224, %s226
      %p230 = scmp.eq.s32.totalorder %s19, 0
      %p231 = por %p229, %p230
      %p232 = scmp.ne.s32.totalorder %s224, %s226
      %p233 = scmp.eq.s32.totalorder %s24, 1
      %p234 = por %p232, %p233
      %p235 = scmp.ne.s32.totalorder %s226, %s227
      %p236 = scmp.eq.s32.totalorder %s24, 0
      %p237 = por %p235, %p236
      %p238 = scmp.ne.s32.totalorder %s226, %s227
      %p239 = scmp.eq.s32.totalorder %s25, 1
      %p240 = por %p238, %p239
      %p242 = scmp.ne.s32.totalorder %s227, %s241
      %p243 = scmp.eq.s32.totalorder %s25, 0
      %p244 = por %p242, %p243
      %s245 = ssub.s32 %s27, %s34
      %s246 = ssub.s32 %s26, %s38
      %s247 = sor.u32 %s245, %s246
      %p248 = scmp.eq.s32.totalorder %s247, 0
      %s250 = sadd.s32 %s249, 1
      %s251 = scalar_select %p248, %s249, %s250
      %p254 = pneg %p248
      %p255 = scmp.eq.s32.totalorder %s19, 1
      %p256 = por %p254, %p255
      %p257 = scmp.ne.s32.totalorder %s249, %s252
      %p258 = scmp.eq.s32.totalorder %s19, 0
      %p259 = por %p257, %p258
      %p260 = scmp.ne.s32.totalorder %s249, %s252
      %p261 = scmp.eq.s32.totalorder %s24, 1
      %p262 = por %p260, %p261
      %p263 = scmp.ne.s32.totalorder %s252, %s253
      %p264 = scmp.eq.s32.totalorder %s24, 0
      %p265 = por %p263, %p264
      %p266 = scmp.ne.s32.totalorder %s252, %s253
      %p267 = scmp.eq.s32.totalorder %s25, 1
      %p268 = por %p266, %p267
      %p270 = scmp.ne.s32.totalorder %s253, %s269
      %p271 = scmp.eq.s32.totalorder %s25, 0
      %p272 = por %p270, %p271
      %p273 = scmp.le.s32.totalorder 1, %s19
      %p274 = scmp.lt.s32.totalorder %s19, 3
      %p275 = pnand %p273, %p274
      %p276 = pneg %p275
      // Predicated region
      $region9: #{tpu_custom_call.1} parent=5 // pred_check
        _
      $region10: #{tpu_custom_call.1} parent=5 // pred_check_branch
        %278 = sbr.rel (%p275) target = $region12
      $region11: #{tpu_custom_call.1} parent=5 // pred_region
        %s279 = ssub.s32 %s19, 1
        // Predicated region
        $region13: #{tpu_custom_call.1} parent=11 // pred_check
          %p280 = pneg %p52
        $region14: #{tpu_custom_call.1} parent=11 // pred_check_branch
          %282 = sbr.rel (%p280) target = $region16
        $region15: #{tpu_custom_call.1} parent=11 // pred_region
          _
        $region16: #{tpu_custom_call.1} parent=11 // pred_fallthru
          _
        // Predicated region
        $region17: #{tpu_custom_call.1} parent=11 // pred_check
          %p283 = pneg %p78
        $region18: #{tpu_custom_call.1} parent=11 // pred_check_branch
          %285 = sbr.rel (%p283) target = $region20
        $region19: #{tpu_custom_call.1} parent=11 // pred_region
          %s286 = smul.u32 4, %s28
          %s288 = ssub.s32 512, 512
          %289 = vsyncadd [#allocation3], %s288
          %s290 = smul.addr %s286, 128
          %s291 = scalar_lea.hbm %s1, %s290
          %s293 = sshll.u32 [#allocation2], 4
          %s294 = int_to_ptr.vmem [resolvable:$true] %s293
          %296 = dma.hbm_to_vmem [thread:$0]  %s291, 512, %s294, [#allocation3]
        $region20: #{tpu_custom_call.1} parent=11 // pred_fallthru
          _
        // Predicated region
        $region21: #{tpu_custom_call.1} parent=11 // pred_check
          %p297 = pneg %p104
        $region22: #{tpu_custom_call.1} parent=11 // pred_check_branch
          %299 = sbr.rel (%p297) target = $region24
        $region23: #{tpu_custom_call.1} parent=11 // pred_region
          %s300 = smul.u32 4, %s28
          %p301 = scmp.lt.s32.totalorder %s300, 3
          %s302 = scalar_select %p301, %s300, 3
          %s303 = scalar_lea.vmem %s2, %s302
          %s304 = smul.u32 4, %s28
        $region24: #{tpu_custom_call.1} parent=11 // pred_fallthru
          _
        // Predicated region
        $region25: #{tpu_custom_call.1} parent=11 // pred_check
          %p305 = pneg %p153
        $region26: #{tpu_custom_call.1} parent=11 // pred_check_branch
          %307 = sbr.rel (%p305) target = $region28
        $region27: #{tpu_custom_call.1} parent=11 // pred_region
          _
        $region28: #{tpu_custom_call.1} parent=11 // pred_fallthru
          _
        // Predicated region
        $region29: #{tpu_custom_call.1} parent=11 // pred_check
          %p308 = pneg %p174
        $region30: #{tpu_custom_call.1} parent=11 // pred_check_branch
          %310 = sbr.rel (%p308) target = $region32
        $region31: #{tpu_custom_call.1} parent=11 // pred_region
          _
        $region32: #{tpu_custom_call.1} parent=11 // pred_fallthru
          _
        // Predicated region
        $region33: #{tpu_custom_call.1} parent=11 // pred_check
          %p311 = pneg %p195
        $region34: #{tpu_custom_call.1} parent=11 // pred_check_branch
          %313 = sbr.rel (%p311) target = $region36
        $region35: #{tpu_custom_call.1} parent=11 // pred_region
          _
        $region36: #{tpu_custom_call.1} parent=11 // pred_fallthru
          _
        // Predicated region
        $region37: #{tpu_custom_call.1} parent=11 // pred_check
          %p314 = pneg %p216
        $region38: #{tpu_custom_call.1} parent=11 // pred_check_branch
          %316 = sbr.rel (%p314) target = $region40
        $region39: #{tpu_custom_call.1} parent=11 // pred_region
          _
        $region40: #{tpu_custom_call.1} parent=11 // pred_fallthru
          _
        // Predicated region
        $region41: #{tpu_custom_call.1} parent=11 // pred_check
          %p317 = pneg %p237
        $region42: #{tpu_custom_call.1} parent=11 // pred_check_branch
          %319 = sbr.rel (%p317) target = $region44
        $region43: #{tpu_custom_call.1} parent=11 // pred_region
          _
        $region44: #{tpu_custom_call.1} parent=11 // pred_fallthru
          _
      $region12: #{tpu_custom_call.1} parent=5 // pred_fallthru
        _
      %p320 = scmp.lt.s32.totalorder %s19, 2
      // Predicated region
      $region45: #{tpu_custom_call.1} parent=5 // pred_check
        %p321 = pneg %p320
      $region46: #{tpu_custom_call.1} parent=5 // pred_check_branch
        %323 = sbr.rel (%p321) target = $region48
      $region47: #{tpu_custom_call.1} parent=5 // pred_region
        // Predicated region
        $region49: #{tpu_custom_call.1} parent=47 // pred_check
          %p324 = pneg %p126
        $region50: #{tpu_custom_call.1} parent=47 // pred_check_branch
          %326 = sbr.rel (%p324) target = $region52
        $region51: #{tpu_custom_call.1} parent=47 // pred_region
          %s327 = smul.u32 4, %s26
          %p328 = scmp.lt.s32.totalorder %s27, 1
          %s329 = scalar_select %p328, %s27, 1
          %p330 = scmp.lt.s32.totalorder %s327, 3
          %s331 = scalar_select %p330, %s327, 3
          %s332 = smul.addr %s329, 4
          %s333 = sadd.s32 %s331, %s332
          %s334 = smul.addr %s333, 2
          %s335 = scalar_lea.vmem %s3, %s334
          %s336 = smul.u32 4, %s26
        $region52: #{tpu_custom_call.1} parent=47 // pred_fallthru
          _
      $region48: #{tpu_custom_call.1} parent=5 // pred_fallthru
        _
      %p337 = scmp.le.s32.totalorder 1, %s19
      %p338 = scmp.lt.s32.totalorder %s19, 3
      %p339 = pnand %p337, %p338
      %p340 = pneg %p339
      // Predicated region
      $region53: #{tpu_custom_call.1} parent=5 // pred_check
        _
      $region54: #{tpu_custom_call.1} parent=5 // pred_check_branch
        %342 = sbr.rel (%p339) target = $region56
      $region55: #{tpu_custom_call.1} parent=5 // pred_region
        %s343 = ssub.s32 %s19, 1
        // Predicated region
        $region57: #{tpu_custom_call.1} parent=55 // pred_check
          %p344 = pneg %p78
        $region58: #{tpu_custom_call.1} parent=55 // pred_check_branch
          %346 = sbr.rel (%p344) target = $region60
        $region59: #{tpu_custom_call.1} parent=55 // pred_region
          %347 = dma.done [#allocation3], 512
        $region60: #{tpu_custom_call.1} parent=55 // pred_fallthru
          _
        %p348 = pneg %p52
        %p349 = pneg %p49
        %p350 = pneg %p78
        %p351 = pneg %p75
        %s352 = smul.u32 4, %s28
        %p353 = scmp.lt.s32.totalorder %s352, 3
        %s354 = scalar_select %p353, %s352, 3
        %s355 = scalar_lea.vmem %s2, %s354
        %p356 = pneg %p104
        %p357 = pneg %p101
        %s358 = smul.u32 4, %s28
        %p359 = scmp.lt.s32.totalorder %s29, 1
        %s360 = scalar_select %p359, %s29, 1
        %p361 = scmp.lt.s32.totalorder %s358, 3
        %s362 = scalar_select %p361, %s358, 3
        %s363 = smul.addr %s360, 4
        %s364 = sadd.s32 %s362, %s363
        %s365 = smul.addr %s364, 2
        %s366 = scalar_lea.vmem %s3, %s365
        %p367 = pneg %p132
        %p368 = pneg %p129
        %p369 = pneg %p153
        %p370 = pneg %p150
        %p371 = pneg %p174
        %p372 = pneg %p171
        %p373 = pneg %p195
        %p374 = pneg %p192
        %p375 = pneg %p216
        %p376 = pneg %p213
        %p377 = pneg %p237
        %p378 = pneg %p234
        %p379 = pneg %p265
        %p380 = pneg %p262
        %s381 = sand.u32 %s252, 1
        %s382 = scalar_lea.sflag [#allocation4], %s381
        %s383 = sand.u32 %s252, 1
        %s384 = smul.addr %s383, 16
        %s385 = scalar_lea.vmem [#allocation5], %s384
        %s386 = smul.u32 4, %s28
        %s387 = smul.u32 4, %s28
        %p388 = scmp.lt.s32.totalorder %s387, 3
        %s389 = scalar_select %p388, %s387, 3
        %s390 = scalar_lea.vmem %s2, %s389
        %s391 = smul.u32 4, %s28
        %s392 = smul.u32 4, %s28
        %p393 = scmp.lt.s32.totalorder %s29, 1
        %s394 = scalar_select %p393, %s29, 1
        %p395 = scmp.lt.s32.totalorder %s392, 3
        %s396 = scalar_select %p395, %s392, 3
        %s397 = smul.addr %s394, 4
        %s398 = sadd.s32 %s396, %s397
        %s399 = smul.addr %s398, 2
        %s400 = scalar_lea.vmem %s3, %s399
        %s401 = smul.u32 4, %s28
        %s402 = smul.u32 4, %s28
        %v405 = vld [vmem:[%s0] sm:$0x1]
        %v406 = vlaneseq
        %v407 = vshrl.u32 %v406, 7
        %v408 = vstv %s29
        %vm409 = vcmp.eq.s32.totalorder %v407, %v408
        %v410 = vsel %vm409, 1, 0
        %v411 = vpack.c.b16 %v410, %v410
        %vm412 = vcmp.ne.s16.totalorder %v411, 0
        %v413 = vsel %vm412, %v405, 0
        %v414 = vunpack.c.l.bf16 %v413
        %vm415 = vcmask 254976
        %v416 = vsel %vm415, %v414, 0.0
        %v417 = vrot.slane %v416, 4
        %v418 = vadd.f32 %v416, %v417
        %v419 = vrot.slane %v418, 2
        %v420 = vadd.f32 %v418, %v419
        %v421 = vrot.slane %v420, 1
        %v422 = vadd.f32 %v420, %v421
        %v423 = vpack.c.bf16 %v422, %v422
        %v424 = vld [vmem:[#allocation2] sm:$0xff]
        %v425 = vld [vmem:[#allocation2 + $0x8] sm:$0xff]
        %v426 = vld [vmem:[#allocation2 + $0x10] sm:$0xff]
        %v427 = vld [vmem:[#allocation2 + $0x18] sm:$0xff]
        %v428 = vunpack.c.l.s8.bf16 %v424
        %v429 = vunpack.c.l.s8.bf16 %v425
        %v430 = vunpack.c.l.s8.bf16 %v426
        %v431 = vunpack.c.l.s8.bf16 %v427
        %v432 = vunpack.c.h.s8.bf16 %v424
        %v433 = vunpack.c.h.s8.bf16 %v425
        %v434 = vunpack.c.h.s8.bf16 %v426
        %v435 = vunpack.c.h.s8.bf16 %v427
        %v436 = vld [vmem:[%s390] sm:$0xf]
        %v437 = vunpack.c.l.bf16 %v436
        %vm438 = vcmask 261120
        %v440 = vsel %vm438, %v423, 0
        %442 = vmatprep.subr.bf16.mxu0 %v429
        %443 = vmatpush1.bf16.msra.mxu0 %v428
        %444 = vmatprep.subr.bf16.mxu0 %v433
        %445 = vmatpush1.bf16.msra.mxu0 %v432
        %446 = vmatprep.subr.bf16.mxu0 0
        %447 = vmatpush1.bf16.msra.mxu0 0
        %448 = vmatprep.subr.bf16.mxu0 0
        %449 = vmatpush1.bf16.msra.mxu0 0
        %450 = vmatprep.subr.bf16.mxu0 0
        %451 = vmatpush1.bf16.msra.mxu0 0
        %452 = vmatprep.subr.bf16.mxu0 0
        %453 = vmatpush1.bf16.msra.mxu0 0
        %454 = vmatprep.subr.bf16.mxu0 0
        %455 = vmatpush1.bf16.msra.mxu0 0
        %456 = vmatprep.subr.bf16.mxu0 0
        %457 = vmatpush1.bf16.msra.mxu0 0
        %458 = vmatprep.subr.bf16.mxu0 0
        %459 = vmatpush1.bf16.msra.mxu0 0
        %460 = vmatprep.subr.bf16.mxu0 0
        %461 = vmatpush1.bf16.msra.mxu0 0
        %462 = vmatprep.subr.bf16.mxu0 0
        %463 = vmatpush1.bf16.msra.mxu0 0
        %464 = vmatprep.subr.bf16.mxu0 0
        %465 = vmatpush1.bf16.msra.mxu0 0
        %466 = vmatprep.subr.bf16.mxu0 0
        %467 = vmatpush1.bf16.msra.mxu0 0
        %468 = vmatprep.subr.bf16.mxu0 0
        %469 = vmatpush1.bf16.msra.mxu0 0
        %470 = vmatprep.subr.bf16.mxu0 0
        %471 = vmatpush1.bf16.msra.mxu0 0
        %472 = vmatprep.subr.bf16.mxu0 0
        %473 = vmatpush1.bf16.msra.mxu0 0
        %474 = vmatprep.mubr.bf16.mxu0 0
        %475 = vmatmul.mubr.bf16.gmra.mrb[0].mxu0 %v440
        %v476 = vpop.f32.mrb[0].mxu0
        %v477 = vadd.f32 0.0, %v476
        %v478 = vpop.f32.mrb[0].mxu0
        %v479 = vadd.f32 0.0, %v478
        %v480 = vpop.f32.mrb[0].mxu0
        %v481 = vpop.f32.mrb[0].mxu0
        %482 = vdwg.mxu0
        %483 = vmatprep.subr.bf16.mxu0 %v431
        %484 = vmatpush1.bf16.msra.mxu0 %v430
        %485 = vmatprep.subr.bf16.mxu0 %v435
        %486 = vmatpush1.bf16.msra.mxu0 %v434
        %487 = vmatprep.subr.bf16.mxu0 0
        %488 = vmatpush1.bf16.msra.mxu0 0
        %489 = vmatprep.subr.bf16.mxu0 0
        %490 = vmatpush1.bf16.msra.mxu0 0
        %491 = vmatprep.subr.bf16.mxu0 0
        %492 = vmatpush1.bf16.msra.mxu0 0
        %493 = vmatprep.subr.bf16.mxu0 0
        %494 = vmatpush1.bf16.msra.mxu0 0
        %495 = vmatprep.subr.bf16.mxu0 0
        %496 = vmatpush1.bf16.msra.mxu0 0
        %497 = vmatprep.subr.bf16.mxu0 0
        %498 = vmatpush1.bf16.msra.mxu0 0
        %499 = vmatprep.subr.bf16.mxu0 0
        %500 = vmatpush1.bf16.msra.mxu0 0
        %501 = vmatprep.subr.bf16.mxu0 0
        %502 = vmatpush1.bf16.msra.mxu0 0
        %503 = vmatprep.subr.bf16.mxu0 0
        %504 = vmatpush1.bf16.msra.mxu0 0
        %505 = vmatprep.subr.bf16.mxu0 0
        %506 = vmatpush1.bf16.msra.mxu0 0
        %507 = vmatprep.subr.bf16.mxu0 0
        %508 = vmatpush1.bf16.msra.mxu0 0
        %509 = vmatprep.subr.bf16.mxu0 0
        %510 = vmatpush1.bf16.msra.mxu0 0
        %511 = vmatprep.subr.bf16.mxu0 0
        %512 = vmatpush1.bf16.msra.mxu0 0
        %513 = vmatprep.subr.bf16.mxu0 0
        %514 = vmatpush1.bf16.msra.mxu0 0
        %515 = vmatprep.mubr.bf16.mxu0 0
        %516 = vmatmul.mubr.bf16.gmra.mrb[0].mxu0 %v440
        %v517 = vpop.f32.mrb[0].mxu0
        %v518 = vadd.f32 0.0, %v517
        %v519 = vpop.f32.mrb[0].mxu0
        %v520 = vadd.f32 0.0, %v519
        %v521 = vpop.f32.mrb[0].mxu0
        %v522 = vpop.f32.mrb[0].mxu0
        %523 = vdwg.mxu0
        %v525 = vlaneseq
        %v526 = vshrl.u32 %v525, 7
        %v527 = vsub.s32 0, %v526
        %v528 = vrot.slane %v437, %v527
        %v529 = vlaneseq
        %v530 = vshrl.u32 %v529, 7
        %v531 = vsub.s32 2, %v530
        %v532 = vrot.slane %v437, %v531
        %v533 = vlaneseq
        %v534 = vshrl.u32 %v533, 7
        %v535 = vsub.s32 4, %v534
        %v536 = vrot.slane %v437, %v535
        %v537 = vlaneseq
        %v538 = vshrl.u32 %v537, 7
        %v539 = vsub.s32 6, %v538
        %v540 = vrot.slane %v437, %v539
        %v545 = vmul.f32 %v477, %v528
        %v546 = vmul.f32 %v479, %v532
        %v547 = vmul.f32 %v518, %v536
        %v548 = vmul.f32 %v520, %v540
        %v549 = vlaneseq
        %v550 = vshrl.u32 %v549, 7
        %v551 = vsub.s32 1, %v550
        %v552 = vrot.slane %v437, %v551
        %v553 = vlaneseq
        %v554 = vshrl.u32 %v553, 7
        %v555 = vsub.s32 3, %v554
        %v556 = vrot.slane %v437, %v555
        %v557 = vlaneseq
        %v558 = vshrl.u32 %v557, 7
        %v559 = vsub.s32 5, %v558
        %v560 = vrot.slane %v437, %v559
        %v561 = vlaneseq
        %v562 = vshrl.u32 %v561, 7
        %v563 = vsub.s32 7, %v562
        %v564 = vrot.slane %v437, %v563
        %v569 = vadd.f32 %v545, %v552
        %v570 = vadd.f32 %v546, %v556
        %v571 = vadd.f32 %v547, %v560
        %v572 = vadd.f32 %v548, %v564
        %v573 = vld [vmem:[%s4] sm:$0xf]
        %v574 = vld [vmem:[%s400] sm:$0xff]
        %v575 = vld [vmem:[%s5] sm:$0xff]
        %577 = vset.pattern.permute.xlu0 0
        %578 = vperm.xlu0 %577, %v575
        %v579 = vpop.permute.xlu0 %578
        %v582 = vcombine.high %v574, %v574
        %v584 = vunpack.c.l.s4 1983009808
        %v585 = vunpack.c.0.s8 %v584
        %v586 = vlaneseq
        %v587 = vshrl.u32 %v586, 7
        %v588 = vsub.s32 %v585, %v587
        %v589 = vrot.slane %v574, %v588
        %v591 = vunpack.c.l.s4 1983009808
        %v592 = vunpack.c.0.s8 %v591
        %v593 = vlaneseq
        %v594 = vshrl.u32 %v593, 7
        %v595 = vsub.s32 %v592, %v594
        %v596 = vrot.slane %v582, %v595
        %v597 = vcombine.high %v589, %v589
        %v598 = vcombine.high %v596, %v596
        %vm599 = vcmask 31744
        %v601 = vsel %vm599, %v573, 0
        %vm603 = vcmask 1041408
        %v605 = vsel %vm603, %v589, 0
        %v608 = vsel %vm603, %v597, 0
        %v611 = vsel %vm603, %v596, 0
        %v614 = vsel %vm603, %v598, 0
        %616 = vmatprep.subr.bf16.mxu0 %v608
        %617 = vmatpush1.bf16.msra.mxu0 %v605
        %618 = vmatprep.subr.bf16.mxu0 0
        %619 = vmatpush1.bf16.msra.mxu0 0
        %620 = vmatprep.subr.bf16.mxu0 0
        %621 = vmatpush1.bf16.msra.mxu0 0
        %622 = vmatprep.subr.bf16.mxu0 0
        %623 = vmatpush1.bf16.msra.mxu0 0
        %624 = vmatprep.subr.bf16.mxu0 0
        %625 = vmatpush1.bf16.msra.mxu0 0
        %626 = vmatprep.subr.bf16.mxu0 0
        %627 = vmatpush1.bf16.msra.mxu0 0
        %628 = vmatprep.subr.bf16.mxu0 0
        %629 = vmatpush1.bf16.msra.mxu0 0
        %630 = vmatprep.subr.bf16.mxu0 0
        %631 = vmatpush1.bf16.msra.mxu0 0
        %632 = vmatprep.subr.bf16.mxu0 0
        %633 = vmatpush1.bf16.msra.mxu0 0
        %634 = vmatprep.subr.bf16.mxu0 0
        %635 = vmatpush1.bf16.msra.mxu0 0
        %636 = vmatprep.subr.bf16.mxu0 0
        %637 = vmatpush1.bf16.msra.mxu0 0
        %638 = vmatprep.subr.bf16.mxu0 0
        %639 = vmatpush1.bf16.msra.mxu0 0
        %640 = vmatprep.subr.bf16.mxu0 0
        %641 = vmatpush1.bf16.msra.mxu0 0
        %642 = vmatprep.subr.bf16.mxu0 0
        %643 = vmatpush1.bf16.msra.mxu0 0
        %644 = vmatprep.subr.bf16.mxu0 0
        %645 = vmatpush1.bf16.msra.mxu0 0
        %646 = vmatprep.subr.bf16.mxu0 0
        %647 = vmatpush1.bf16.msra.mxu0 0
        %648 = vmatprep.mubr.bf16.mxu0 0
        %649 = vmatmul.mubr.bf16.gmra.mrb[0].mxu0 %v601
        %v650 = vpop.f32.mrb[0].mxu0
        %v651 = vadd.f32 %v579, %v650
        %v652 = vpop.f32.mrb[0].mxu0
        %v653 = vadd.f32 %v579, %v652
        %v654 = vpop.f32.mrb[0].mxu0
        %v655 = vpop.f32.mrb[0].mxu0
        %656 = vdwg.mxu0
        %657 = vmatprep.subr.bf16.mxu0 %v614
        %658 = vmatpush1.bf16.msra.mxu0 %v611
        %659 = vmatprep.subr.bf16.mxu0 0
        %660 = vmatpush1.bf16.msra.mxu0 0
        %661 = vmatprep.subr.bf16.mxu0 0
        %662 = vmatpush1.bf16.msra.mxu0 0
        %663 = vmatprep.subr.bf16.mxu0 0
        %664 = vmatpush1.bf16.msra.mxu0 0
        %665 = vmatprep.subr.bf16.mxu0 0
        %666 = vmatpush1.bf16.msra.mxu0 0
        %667 = vmatprep.subr.bf16.mxu0 0
        %668 = vmatpush1.bf16.msra.mxu0 0
        %669 = vmatprep.subr.bf16.mxu0 0
        %670 = vmatpush1.bf16.msra.mxu0 0
        %671 = vmatprep.subr.bf16.mxu0 0
        %672 = vmatpush1.bf16.msra.mxu0 0
        %673 = vmatprep.subr.bf16.mxu0 0
        %674 = vmatpush1.bf16.msra.mxu0 0
        %675 = vmatprep.subr.bf16.mxu0 0
        %676 = vmatpush1.bf16.msra.mxu0 0
        %677 = vmatprep.subr.bf16.mxu0 0
        %678 = vmatpush1.bf16.msra.mxu0 0
        %679 = vmatprep.subr.bf16.mxu0 0
        %680 = vmatpush1.bf16.msra.mxu0 0
        %681 = vmatprep.subr.bf16.mxu0 0
        %682 = vmatpush1.bf16.msra.mxu0 0
        %683 = vmatprep.subr.bf16.mxu0 0
        %684 = vmatpush1.bf16.msra.mxu0 0
        %685 = vmatprep.subr.bf16.mxu0 0
        %686 = vmatpush1.bf16.msra.mxu0 0
        %687 = vmatprep.subr.bf16.mxu0 0
        %688 = vmatpush1.bf16.msra.mxu0 0
        %689 = vmatprep.mubr.bf16.mxu0 0
        %690 = vmatmul.mubr.bf16.gmra.mrb[0].mxu0 %v601
        %v691 = vpop.f32.mrb[0].mxu0
        %v692 = vadd.f32 %v579, %v691
        %v693 = vpop.f32.mrb[0].mxu0
        %v694 = vadd.f32 %v579, %v693
        %v695 = vpop.f32.mrb[0].mxu0
        %v696 = vpop.f32.mrb[0].mxu0
        %697 = vdwg.mxu0
        %v698 = vmax.f32 %v651, 0.0
        %v699 = vmax.f32 %v653, 0.0
        %v700 = vmax.f32 %v692, 0.0
        %v701 = vmax.f32 %v694, 0.0
        %v702 = vld [vmem:[%s6] sm:$0xf]
        %v703 = vld [vmem:[%s8] sm:$0xf]
        %705 = vset.pattern.permute.xlu0 0
        %706 = vperm.xlu0 %705, %v703
        %v707 = vpop.permute.xlu0 %706
        %v709 = vlaneseq
        %v710 = vshrl.u32 %v709, 7
        %v711 = vsub.s32 0, %v710
        %v712 = vrot.slane %v569, %v711
        %v713 = vlaneseq
        %v714 = vshrl.u32 %v713, 7
        %v715 = vsub.s32 0, %v714
        %v716 = vrot.slane %v570, %v715
        %v717 = vlaneseq
        %v718 = vshrl.u32 %v717, 7
        %v719 = vsub.s32 0, %v718
        %v720 = vrot.slane %v571, %v719
        %v721 = vlaneseq
        %v722 = vshrl.u32 %v721, 7
        %v723 = vsub.s32 0, %v722
        %v724 = vrot.slane %v572, %v723
        %v725 = vmul.f32 %v707, %v712
        %v726 = vmul.f32 %v707, %v716
        %v727 = vmul.f32 %v707, %v720
        %v728 = vmul.f32 %v707, %v724
        %vm729 = vcmask 64512
        %v731 = vsel %vm729, %v702, 0
        %733 = vmatprep.subr.mxu0 %v699
        %734 = vmatpush1.msra.mxu0 %v698
        %735 = vmatprep.subr.mxu0 0.0
        %736 = vmatpush1.msra.mxu0 0.0
        %737 = vmatprep.subr.mxu0 0.0
        %738 = vmatpush1.msra.mxu0 0.0
        %739 = vmatprep.subr.mxu0 0.0
        %740 = vmatpush1.msra.mxu0 0.0
        %741 = vmatprep.subr.mxu0 0.0
        %742 = vmatpush1.msra.mxu0 0.0
        %743 = vmatprep.subr.mxu0 0.0
        %744 = vmatpush1.msra.mxu0 0.0
        %745 = vmatprep.subr.mxu0 0.0
        %746 = vmatpush1.msra.mxu0 0.0
        %747 = vmatprep.subr.mxu0 0.0
        %748 = vmatpush1.msra.mxu0 0.0
        %749 = vmatprep.subr.mxu0 0.0
        %750 = vmatpush1.msra.mxu0 0.0
        %751 = vmatprep.subr.mxu0 0.0
        %752 = vmatpush1.msra.mxu0 0.0
        %753 = vmatprep.subr.mxu0 0.0
        %754 = vmatpush1.msra.mxu0 0.0
        %755 = vmatprep.subr.mxu0 0.0
        %756 = vmatpush1.msra.mxu0 0.0
        %757 = vmatprep.subr.mxu0 0.0
        %758 = vmatpush1.msra.mxu0 0.0
        %759 = vmatprep.subr.mxu0 0.0
        %760 = vmatpush1.msra.mxu0 0.0
        %761 = vmatprep.subr.mxu0 0.0
        %762 = vmatpush1.msra.mxu0 0.0
        %763 = vmatprep.subr.mxu0 0.0
        %764 = vmatpush1.msra.mxu0 0.0
        %765 = vmatprep.subr.mxu0 0.0
        %766 = vmatpush1.msra.mxu0 0.0
        %767 = vmatprep.subr.mxu0 0.0
        %768 = vmatpush1.msra.mxu0 0.0
        %769 = vmatprep.subr.mxu0 0.0
        %770 = vmatpush1.msra.mxu0 0.0
        %771 = vmatprep.subr.mxu0 0.0
        %772 = vmatpush1.msra.mxu0 0.0
        %773 = vmatprep.subr.mxu0 0.0
        %774 = vmatpush1.msra.mxu0 0.0
        %775 = vmatprep.subr.mxu0 0.0
        %776 = vmatpush1.msra.mxu0 0.0
        %777 = vmatprep.subr.mxu0 0.0
        %778 = vmatpush1.msra.mxu0 0.0
        %779 = vmatprep.subr.mxu0 0.0
        %780 = vmatpush1.msra.mxu0 0.0
        %781 = vmatprep.subr.mxu0 0.0
        %782 = vmatpush1.msra.mxu0 0.0
        %783 = vmatprep.subr.mxu0 0.0
        %784 = vmatpush1.msra.mxu0 0.0
        %785 = vmatprep.subr.mxu0 0.0
        %786 = vmatpush1.msra.mxu0 0.0
        %787 = vmatprep.subr.mxu0 0.0
        %788 = vmatpush1.msra.mxu0 0.0
        %789 = vmatprep.subr.mxu0 0.0
        %790 = vmatpush1.msra.mxu0 0.0
        %791 = vmatprep.subr.mxu0 0.0
        %792 = vmatpush1.msra.mxu0 0.0
        %793 = vmatprep.subr.mxu0 0.0
        %794 = vmatpush1.msra.mxu0 0.0
        %795 = vmatprep.subr.mxu0 0.0
        %796 = vmatpush1.msra.mxu0 0.0
        %797 = vmatprep.mubr.f32.mxu0 0.0
        %798 = vmatmul.mubr.f32.gmra.mrb[0].mxu0 %v731
        %v799 = vpop.f32.mrb[0].mxu0
        %v800 = vadd.f32 %v725, %v799
        %v801 = vpop.f32.mrb[0].mxu0
        %v802 = vadd.f32 %v726, %v801
        %803 = vdwg.mxu0
        %804 = vmatprep.subr.mxu0 %v701
        %805 = vmatpush1.msra.mxu0 %v700
        %806 = vmatprep.subr.mxu0 0.0
        %807 = vmatpush1.msra.mxu0 0.0
        %808 = vmatprep.subr.mxu0 0.0
        %809 = vmatpush1.msra.mxu0 0.0
        %810 = vmatprep.subr.mxu0 0.0
        %811 = vmatpush1.msra.mxu0 0.0
        %812 = vmatprep.subr.mxu0 0.0
        %813 = vmatpush1.msra.mxu0 0.0
        %814 = vmatprep.subr.mxu0 0.0
        %815 = vmatpush1.msra.mxu0 0.0
        %816 = vmatprep.subr.mxu0 0.0
        %817 = vmatpush1.msra.mxu0 0.0
        %818 = vmatprep.subr.mxu0 0.0
        %819 = vmatpush1.msra.mxu0 0.0
        %820 = vmatprep.subr.mxu0 0.0
        %821 = vmatpush1.msra.mxu0 0.0
        %822 = vmatprep.subr.mxu0 0.0
        %823 = vmatpush1.msra.mxu0 0.0
        %824 = vmatprep.subr.mxu0 0.0
        %825 = vmatpush1.msra.mxu0 0.0
        %826 = vmatprep.subr.mxu0 0.0
        %827 = vmatpush1.msra.mxu0 0.0
        %828 = vmatprep.subr.mxu0 0.0
        %829 = vmatpush1.msra.mxu0 0.0
        %830 = vmatprep.subr.mxu0 0.0
        %831 = vmatpush1.msra.mxu0 0.0
        %832 = vmatprep.subr.mxu0 0.0
        %833 = vmatpush1.msra.mxu0 0.0
        %834 = vmatprep.subr.mxu0 0.0
        %835 = vmatpush1.msra.mxu0 0.0
        %836 = vmatprep.subr.mxu0 0.0
        %837 = vmatpush1.msra.mxu0 0.0
        %838 = vmatprep.subr.mxu0 0.0
        %839 = vmatpush1.msra.mxu0 0.0
        %840 = vmatprep.subr.mxu0 0.0
        %841 = vmatpush1.msra.mxu0 0.0
        %842 = vmatprep.subr.mxu0 0.0
        %843 = vmatpush1.msra.mxu0 0.0
        %844 = vmatprep.subr.mxu0 0.0
        %845 = vmatpush1.msra.mxu0 0.0
        %846 = vmatprep.subr.mxu0 0.0
        %847 = vmatpush1.msra.mxu0 0.0
        %848 = vmatprep.subr.mxu0 0.0
        %849 = vmatpush1.msra.mxu0 0.0
        %850 = vmatprep.subr.mxu0 0.0
        %851 = vmatpush1.msra.mxu0 0.0
        %852 = vmatprep.subr.mxu0 0.0
        %853 = vmatpush1.msra.mxu0 0.0
        %854 = vmatprep.subr.mxu0 0.0
        %855 = vmatpush1.msra.mxu0 0.0
        %856 = vmatprep.subr.mxu0 0.0
        %857 = vmatpush1.msra.mxu0 0.0
        %858 = vmatprep.subr.mxu0 0.0
        %859 = vmatpush1.msra.mxu0 0.0
        %860 = vmatprep.subr.mxu0 0.0
        %861 = vmatpush1.msra.mxu0 0.0
        %862 = vmatprep.subr.mxu0 0.0
        %863 = vmatpush1.msra.mxu0 0.0
        %864 = vmatprep.subr.mxu0 0.0
        %865 = vmatpush1.msra.mxu0 0.0
        %866 = vmatprep.subr.mxu0 0.0
        %867 = vmatpush1.msra.mxu0 0.0
        %868 = vmatprep.mubr.f32.mxu0 0.0
        %869 = vmatmul.mubr.f32.gmra.mrb[0].mxu0 %v731
        %v870 = vpop.f32.mrb[0].mxu0
        %v871 = vadd.f32 %v727, %v870
        %v872 = vpop.f32.mrb[0].mxu0
        %v873 = vadd.f32 %v728, %v872
        %874 = vdwg.mxu0
        %v875 = vld [vmem:[%s7] sm:$0xf]
        %877 = vset.pattern.permute.xlu0 0
        %878 = vperm.xlu0 %877, %v875
        %v879 = vpop.permute.xlu0 %878
        %v881 = vadd.f32 %v800, %v879
        %v882 = vadd.f32 %v802, %v879
        %v883 = vadd.f32 %v871, %v879
        %v884 = vadd.f32 %v873, %v879
        %vm885 = vcmask 1043456
        %v886 = vsel %vm885, %v881, -inf
        %v887 = vrot.slane %v886, 4
        %v888 = vmax.f32 %v886, %v887
        %v889 = vrot.slane %v888, 2
        %v890 = vmax.f32 %v888, %v889
        %v891 = vrot.slane %v890, 1
        %v892 = vmax.f32 %v890, %v891
        %v893 = vsel %vm885, %v882, -inf
        %v894 = vrot.slane %v893, 4
        %v895 = vmax.f32 %v893, %v894
        %v896 = vrot.slane %v895, 2
        %v897 = vmax.f32 %v895, %v896
        %v898 = vrot.slane %v897, 1
        %v899 = vmax.f32 %v897, %v898
        %v900 = vsel %vm885, %v883, -inf
        %v901 = vrot.slane %v900, 4
        %v902 = vmax.f32 %v900, %v901
        %v903 = vrot.slane %v902, 2
        %v904 = vmax.f32 %v902, %v903
        %v905 = vrot.slane %v904, 1
        %v906 = vmax.f32 %v904, %v905
        %v907 = vsel %vm885, %v884, -inf
        %v908 = vrot.slane %v907, 4
        %v909 = vmax.f32 %v907, %v908
        %v910 = vrot.slane %v909, 2
        %v911 = vmax.f32 %v909, %v910
        %v912 = vrot.slane %v911, 1
        %v913 = vmax.f32 %v911, %v912
        %v914 = vsub.f32 %v881, %v892
        %v915 = vsub.f32 %v882, %v899
        %v916 = vsub.f32 %v883, %v906
        %v917 = vsub.f32 %v884, %v913
        %v918 = vmul.f32 %v914, 1.442695
        %v919 = vpow.pop %v918
        %v920 = vmul.f32 %v915, 1.442695
        %v921 = vpow.pop %v920
        %v922 = vmul.f32 %v916, 1.442695
        %v923 = vpow.pop %v922
        %v924 = vmul.f32 %v917, 1.442695
        %v925 = vpow.pop %v924
        %v926 = vsel %vm885, %v919, 0.0
        %v927 = vrot.slane %v926, 4
        %v928 = vadd.f32 %v926, %v927
        %v929 = vrot.slane %v928, 2
        %v930 = vadd.f32 %v928, %v929
        %v931 = vrot.slane %v930, 1
        %v932 = vadd.f32 %v930, %v931
        %v933 = vsel %vm885, %v921, 0.0
        %v934 = vrot.slane %v933, 4
        %v935 = vadd.f32 %v933, %v934
        %v936 = vrot.slane %v935, 2
        %v937 = vadd.f32 %v935, %v936
        %v938 = vrot.slane %v937, 1
        %v939 = vadd.f32 %v937, %v938
        %v940 = vsel %vm885, %v923, 0.0
        %v941 = vrot.slane %v940, 4
        %v942 = vadd.f32 %v940, %v941
        %v943 = vrot.slane %v942, 2
        %v944 = vadd.f32 %v942, %v943
        %v945 = vrot.slane %v944, 1
        %v946 = vadd.f32 %v944, %v945
        %v947 = vsel %vm885, %v925, 0.0
        %v948 = vrot.slane %v947, 4
        %v949 = vadd.f32 %v947, %v948
        %v950 = vrot.slane %v949, 2
        %v951 = vadd.f32 %v949, %v950
        %v952 = vrot.slane %v951, 1
        %v953 = vadd.f32 %v951, %v952
        %v954 = vrcp.pop %v932
        %v955 = vrcp.pop %v939
        %v956 = vrcp.pop %v946
        %v957 = vrcp.pop %v953
        %v958 = vmul.f32 %v919, %v954
        %v959 = vmul.f32 %v921, %v955
        %v960 = vmul.f32 %v923, %v956
        %v961 = vmul.f32 %v925, %v957
        %v966 = vcombine.low %v958, %v959
        %v967 = vcombine.low %v960, %v961
        %970 = vst [vmem:[%s385] sm:$0xff] %v966
        %971 = vst [vmem:[%s385 + $0x8] sm:$0xff] %v967
        %s972 = sand.u32 %s252, 1
        %s973 = scalar_lea.sflag [#allocation4], %s972
        %s974 = sand.u32 %s252, 1
        %s975 = smul.addr %s974, 16
        %s976 = scalar_lea.vmem [#allocation5], %s975
        // Predicated region
        $region61: #{tpu_custom_call.1} parent=55 // pred_check
          %p977 = pneg %p262
        $region62: #{tpu_custom_call.1} parent=55 // pred_check_branch
          %979 = sbr.rel (%p977) target = $region64
        $region63: #{tpu_custom_call.1} parent=55 // pred_region
          %s980 = smul.u32 4, %s28
          %s982 = ssub.s32 256, 256
          %983 = vsyncadd %s973, %s982
          %s984 = smul.addr %s29, 4
          %s985 = sadd.s32 %s980, %s984
          %s986 = smul.addr %s985, 64
          %s987 = scalar_lea.hbm %s9, %s986
          %s989 = sshll.u32 %s976, 4
          %s990 = int_to_ptr.vmem [resolvable:$true] %s989
          %992 = dma.vmem_to_hbm [thread:$0]  %s990, 256, %s987, %s973
        $region64: #{tpu_custom_call.1} parent=55 // pred_fallthru
          _
      $region56: #{tpu_custom_call.1} parent=5 // pred_fallthru
        _
      %p993 = scmp.le.s32.totalorder 2, %s19
      // Predicated region
      $region65: #{tpu_custom_call.1} parent=5 // pred_check
        %p994 = pneg %p993
      $region66: #{tpu_custom_call.1} parent=5 // pred_check_branch
        %996 = sbr.rel (%p994) target = $region68
      $region67: #{tpu_custom_call.1} parent=5 // pred_region
        %s997 = ssub.s32 %s19, 2
        // Predicated region
        $region69: #{tpu_custom_call.1} parent=67 // pred_check
          %p998 = pneg %p268
        $region70: #{tpu_custom_call.1} parent=67 // pred_check_branch
          %1000 = sbr.rel (%p998) target = $region72
        $region71: #{tpu_custom_call.1} parent=67 // pred_region
          %s1001 = sand.u32 %s253, 1
          %s1002 = scalar_lea.sflag [#allocation4], %s1001
          %s1003 = sand.u32 %s253, 1
          %s1004 = smul.addr %s1003, 16
          %s1005 = scalar_lea.vmem [#allocation5], %s1004
          %1006 = dma.done %s1002, 256
        $region72: #{tpu_custom_call.1} parent=67 // pred_fallthru
          _
      $region68: #{tpu_custom_call.1} parent=5 // pred_fallthru
        _
    $region6: #{tpu_custom_call.1} parent=1 // loop_footer
      %s23 = sadd.s32 1, %s19
    $region7: #{tpu_custom_call.1} parent=1 // loop_footer_branch
      %18 = sbr.rel target = $region3
    $region8: #{tpu_custom_call.1} parent=1 // loop_exit
      _
    %1007 = vsyncpa [#allocation3], 1
    %s1008 = scalar_lea.sflag [#allocation3], 1
    %1009 = vsyncpa %s1008, 1
    %1010 = vsyncpa [#allocation4], 1
    %s1011 = scalar_lea.sflag [#allocation4], 1
    %1012 = vsyncpa %s1011, 1

</llo_original>
